<compile_context>
chip_gen: v6e
topology: v6e:2x2x1
jax: 0.10.0
libtpu: 0.0.40
codegen_flags: <defaults>
</compile_context>

<pallas_src>
import functools

import jax
import jax.numpy as jnp
import numpy as np
from jax.experimental import pallas as pl
from jax.experimental.pallas import tpu as pltpu


def _round_up(n, m):
    return ((n + m - 1) // m) * m


def _pad2(x, rows, cols):
    return jnp.pad(x, ((0, rows - x.shape[0]), (0, cols - x.shape[1])))


# ---------------------------------------------------------------------------
# Pallas kernel: one RNN step per grid iteration, hidden resident in VMEM.
# ---------------------------------------------------------------------------
def _rnn_seq_kernel(x_ref, h0_ref, wx_ref, wh_ref, b_ref,
                    out_ref, hid_ref, *, h_pad):
    t = pl.program_id(0)

    @pl.when(t == 0)
    def _seed():
        hid_ref[...] = h0_ref[...]          # seed the VMEM-resident hidden state

    h_prev = hid_ref[...]                   # (B_pad, H_pad)  previous hidden
    x_t = x_ref[0]                          # (B_pad, I_pad)  this step's input

    # cat([x, h]) @ [W_i2h | W_i2o] + [b_i2h | b_i2o]
    #   == x @ Wx_fused + h @ Wh_fused + b_fused   (concat removed, heads fused)
    fused = (jnp.dot(x_t, wx_ref[...], preferred_element_type=jnp.float32)
             + jnp.dot(h_prev, wh_ref[...], preferred_element_type=jnp.float32)
             + b_ref[...])                  # (B_pad, H_pad + O_pad)

    hid_ref[...] = fused[:, :h_pad]         # new hidden (stays in VMEM)
    out_ref[0] = fused[:, h_pad:]           # lane-dense per-step logits


# ---------------------------------------------------------------------------
# Wrapper: weight split/fuse/pad (one-time glue) + single fused pallas_call.
# ---------------------------------------------------------------------------
def rnn_forward_sequence(x_seq, h0, w_i2h_t, b_i2h, w_i2o_t, b_i2o):
    """Run the RNN cell over a whole sequence in ONE pallas_call.

    x_seq: (T, B, I) inputs, h0: (B, H) initial hidden,
    w_i2h_t: (I+H, H), b_i2h: (H,), w_i2o_t: (I+H, O), b_i2o: (O,)
    returns (outputs (T, B, O), final_hidden (B, H))
    """
    T, B, I = x_seq.shape
    H = w_i2h_t.shape[1]
    O = w_i2o_t.shape[1]

    B_pad = _round_up(B, 8)
    I_pad = _round_up(I, 128)
    H_pad = _round_up(H, 128)
    O_pad = _round_up(O, 128)
    N_pad = H_pad + O_pad

    # Split the concat-layout weights into x-part / h-part and fuse the two
    # heads along the output axis.  Zero padding keeps the padded hidden lanes
    # exactly zero through the recurrence.
    wx = jnp.concatenate([_pad2(w_i2h_t[:I], I_pad, H_pad),
                          _pad2(w_i2o_t[:I], I_pad, O_pad)], axis=1)   # (I_pad, N_pad)
    wh = jnp.concatenate([_pad2(w_i2h_t[I:], H_pad, H_pad),
                          _pad2(w_i2o_t[I:], H_pad, O_pad)], axis=1)   # (H_pad, N_pad)
    bias = jnp.concatenate([jnp.pad(b_i2h, (0, H_pad - H)),
                            jnp.pad(b_i2o, (0, O_pad - O))])[None, :]  # (1, N_pad)

    x_pad = jnp.pad(x_seq.astype(jnp.float32),
                    ((0, 0), (0, B_pad - B), (0, I_pad - I)))
    h0_pad = jnp.pad(h0.astype(jnp.float32),
                     ((0, B_pad - B), (0, H_pad - H)))

    kernel = functools.partial(_rnn_seq_kernel, h_pad=H_pad)

    out_pad, hid_pad = pl.pallas_call(
        kernel,
        out_shape=(jax.ShapeDtypeStruct((T, B_pad, O_pad), jnp.float32),
                   jax.ShapeDtypeStruct((B_pad, H_pad), jnp.float32)),
        grid_spec=pltpu.PrefetchScalarGridSpec(
            num_scalar_prefetch=0,
            grid=(T,),
            in_specs=[
                pl.BlockSpec((1, B_pad, I_pad), lambda t: (t, 0, 0)),   # x_t stream
                pl.BlockSpec((B_pad, H_pad), lambda t: (0, 0)),         # h0
                pl.BlockSpec((I_pad, N_pad), lambda t: (0, 0)),         # Wx (resident)
                pl.BlockSpec((H_pad, N_pad), lambda t: (0, 0)),         # Wh (resident)
                pl.BlockSpec((1, N_pad), lambda t: (0, 0)),             # fused bias
            ],
            out_specs=(
                pl.BlockSpec((1, B_pad, O_pad), lambda t: (t, 0, 0)),   # per-step out
                pl.BlockSpec((B_pad, H_pad), lambda t: (0, 0)),         # hidden (VMEM-resident)
            ),
        ),
        compiler_params=pltpu.CompilerParams(
            dimension_semantics=("arbitrary",)),    # sequential recurrence
    )(x_pad, h0_pad, wx, wh, bias)

    return out_pad[:, :B, :O], hid_pad[:B, :H]


def rnn_forward(x, h, w_i2h_t, b_i2h, w_i2o_t, b_i2o):
    """Single cell step, exactly RNN.forward(input, hidden) -> (output, hidden)."""
    out_seq, hid = rnn_forward_sequence(x[None], h, w_i2h_t, b_i2h, w_i2o_t, b_i2o)
    return out_seq[0], hid


# ---------------------------------------------------------------------------
# Module setup mirroring the PyTorch script (deterministic init, no files).
# ---------------------------------------------------------------------------
chars = 'abcdefghijklmnopqrstuvwxyz 01'
char_list = [c for c in chars]
n_letters = len(char_list)          # 29
n_hidden = 100


def string_to_onehot(string):
    start = np.zeros(shape=len(char_list), dtype=np.int64)
    end = np.zeros(shape=len(char_list), dtype=np.int64)
    start[-2] = 1
    end[-1] = 1
    for ch in string:
        idx = char_list.index(ch)
        zero = np.zeros(shape=len(char_list), dtype=np.int64)
        zero[idx] = 1
        start = np.vstack([start, zero])
    return np.vstack([start, end])


def init_linear(key, in_features, out_features):
    # PyTorch nn.Linear default: U(-1/sqrt(in), 1/sqrt(in)) for weight & bias.
    kw, kb = jax.random.split(key)
    bound = 1.0 / np.sqrt(in_features)
    # store weight transposed: (in_features, out_features)
    w_t = jax.random.uniform(kw, (in_features, out_features),
                             dtype=jnp.float32, minval=-bound, maxval=bound)
    b = jax.random.uniform(kb, (out_features,),
                           dtype=jnp.float32, minval=-bound, maxval=bound)
    return w_t, b


if __name__ == "__main__":
    key = jax.random.PRNGKey(0)
    k_i2h, k_i2o = jax.random.split(key)

    in_comb = n_letters + n_hidden                          # 129
    w_i2h_t, b_i2h = init_linear(k_i2h, in_comb, n_hidden)  # (129,100),(100,)
    w_i2o_t, b_i2o = init_linear(k_i2o, in_comb, n_letters) # (129, 29),(29,)

    # Full one-hot sequence for 'hello pytorch' (start + chars + end), B=1.
    one_hot = jnp.asarray(string_to_onehot('hello pytorch'), dtype=jnp.float32)
    x_seq = one_hot[:, None, :]                             # (T=15, 1, 29)
    T = x_seq.shape[0]
    h0 = jnp.zeros((1, n_hidden), dtype=jnp.float32)        # init_hidden()

    fwd = jax.jit(rnn_forward_sequence)
    outs, hid = fwd(x_seq, h0, w_i2h_t, b_i2h, w_i2o_t, b_i2o)
    outs = jax.block_until_ready(outs)
    hid = jax.block_until_ready(hid)
    assert outs.shape == (T, 1, n_letters) and hid.shape == (1, n_hidden)

    # Pure-JAX step-by-step reference of the module's forward semantics.
    h_ref = h0
    ref_outs = []
    for t in range(T):
        comb = jnp.concatenate([x_seq[t], h_ref], axis=1)
        ref_outs.append(comb @ w_i2o_t + b_i2o)             # output (old hidden)
        h_ref = comb @ w_i2h_t + b_i2h                      # new hidden
    ref_outs = jnp.stack(ref_outs)

    np.testing.assert_allclose(np.asarray(outs), np.asarray(ref_outs),
                               rtol=1e-4, atol=1e-4)
    np.testing.assert_allclose(np.asarray(hid), np.asarray(h_ref),
                               rtol=1e-4, atol=1e-4)

    # Single-step forward (the exact call the PyTorch script makes).
    out1, hid1 = rnn_forward(one_hot[0:1, :], h0,
                             w_i2h_t, b_i2h, w_i2o_t, b_i2o)
    out1 = jax.block_until_ready(out1)
    np.testing.assert_allclose(np.asarray(out1), np.asarray(ref_outs[0]),
                               rtol=1e-4, atol=1e-4)
    np.testing.assert_allclose(np.asarray(hid1),
                               np.asarray(x_seq[0] @ w_i2h_t[:n_letters]
                                          + h0 @ w_i2h_t[n_letters:] + b_i2h),
                               rtol=1e-4, atol=1e-4)

    print("KERNEL_OK")
</pallas_src>

<mosaic_0001>
module attributes {stable_mosaic.version = 11 : i64} {
  func.func @_rnn_seq_kernel(%arg0: i32, %arg1: memref<1x8x128xf32, #tpu.memory_space<vmem>>, %arg2: memref<8x128xf32, #tpu.memory_space<vmem>>, %arg3: memref<128x256xf32, #tpu.memory_space<vmem>>, %arg4: memref<128x256xf32, #tpu.memory_space<vmem>>, %arg5: memref<1x256xf32, #tpu.memory_space<vmem>>, %arg6: memref<1x8x128xf32, #tpu.memory_space<vmem>>, %arg7: memref<8x128xf32, #tpu.memory_space<vmem>>) attributes {dimension_semantics = [#tpu.dimension_semantics<arbitrary>], iteration_bounds = array<i64: 15>, scalar_prefetch = 0 : i64, scratch_operands = 0 : i64, tpu.core_type = #tpu.core_type<tc>, window_params = [{transform_indices = @transform_0, window_bounds = array<i64: 1, 8, 128>}, {pipeline_mode = #tpu.pipeline_mode<synchronous>, transform_indices = @transform_1, window_bounds = array<i64: 8, 128>}, {pipeline_mode = #tpu.pipeline_mode<synchronous>, transform_indices = @transform_2, window_bounds = array<i64: 128, 256>}, {pipeline_mode = #tpu.pipeline_mode<synchronous>, transform_indices = @transform_3, window_bounds = array<i64: 128, 256>}, {pipeline_mode = #tpu.pipeline_mode<synchronous>, transform_indices = @transform_4, window_bounds = array<i64: 1, 256>}, {transform_indices = @transform_5, window_bounds = array<i64: 1, 8, 128>}, {pipeline_mode = #tpu.pipeline_mode<synchronous>, transform_indices = @transform_6, window_bounds = array<i64: 8, 128>}]} {
    %c0_i32 = arith.constant 0 : i32
    %0 = arith.cmpi eq, %arg0, %c0_i32 : i32
    %1 = arith.extui %0 : i1 to i32
    %c0_i32_0 = arith.constant 0 : i32
    %2 = arith.cmpi ne, %1, %c0_i32_0 : i32
    scf.if %2 {
      %c0_17 = arith.constant 0 : index
      %c0_18 = arith.constant 0 : index
      %20 = vector.load %arg2[%c0_17, %c0_18] : memref<8x128xf32, #tpu.memory_space<vmem>>, vector<8x128xf32>
      %c0_19 = arith.constant 0 : index
      %c0_20 = arith.constant 0 : index
      %21 = vector.load %arg7[%c0_19, %c0_20] : memref<8x128xf32, #tpu.memory_space<vmem>>, vector<8x128xf32>
      tpu.vector_store %arg7[%c0_19, %c0_20], %20 {strides = array<i32>} : memref<8x128xf32, #tpu.memory_space<vmem>>, vector<8x128xf32>,
    } else {
    }
    %c0 = arith.constant 0 : index
    %c0_1 = arith.constant 0 : index
    %3 = vector.load %arg7[%c0, %c0_1] : memref<8x128xf32, #tpu.memory_space<vmem>>, vector<8x128xf32>
    %c0_2 = arith.constant 0 : index
    %c0_3 = arith.constant 0 : index
    %c0_4 = arith.constant 0 : index
    %4 = vector.load %arg1[%c0_2, %c0_3, %c0_4] : memref<1x8x128xf32, #tpu.memory_space<vmem>>, vector<1x8x128xf32>
    %5 = vector.shape_cast %4 : vector<1x8x128xf32> to vector<8x128xf32>
    %c0_5 = arith.constant 0 : index
    %c0_6 = arith.constant 0 : index
    %6 = vector.load %arg3[%c0_5, %c0_6] : memref<128x256xf32, #tpu.memory_space<vmem>>, vector<128x256xf32>
    %cst = arith.constant dense<0.000000e+00> : vector<8x256xf32>
    %7 = tpu.matmul %5, %6, %cst {dimension_numbers = #tpu.dot_dimension_numbers<[1], [0], [0], [1], [0, 0, 1, 1], [], []>} : vector<8x128xf32>, vector<128x256xf32>, vector<8x256xf32> -> vector<8x256xf32>
    %c0_7 = arith.constant 0 : index
    %c0_8 = arith.constant 0 : index
    %8 = vector.load %arg4[%c0_7, %c0_8] : memref<128x256xf32, #tpu.memory_space<vmem>>, vector<128x256xf32>
    %cst_9 = arith.constant dense<0.000000e+00> : vector<8x256xf32>
    %9 = tpu.matmul %3, %8, %cst_9 {dimension_numbers = #tpu.dot_dimension_numbers<[1], [0], [0], [1], [0, 0, 1, 1], [], []>} : vector<8x128xf32>, vector<128x256xf32>, vector<8x256xf32> -> vector<8x256xf32>
    %10 = arith.addf %7, %9 : vector<8x256xf32>
    %c0_10 = arith.constant 0 : index
    %c0_11 = arith.constant 0 : index
    %11 = vector.load %arg5[%c0_10, %c0_11] : memref<1x256xf32, #tpu.memory_space<vmem>>, vector<1x256xf32>
    %12 = vector.broadcast %11 : vector<1x256xf32> to vector<8x256xf32>
    %13 = arith.addf %10, %12 : vector<8x256xf32>
    %14 = vector.extract_strided_slice %13 {offsets = [0, 0], sizes = [8, 128], strides = [1, 1]} : vector<8x256xf32> to vector<8x128xf32>
    %c0_12 = arith.constant 0 : index
    %c0_13 = arith.constant 0 : index
    %15 = vector.load %arg7[%c0_12, %c0_13] : memref<8x128xf32, #tpu.memory_space<vmem>>, vector<8x128xf32>
    tpu.vector_store %arg7[%c0_12, %c0_13], %14 {strides = array<i32>} : memref<8x128xf32, #tpu.memory_space<vmem>>, vector<8x128xf32>,
    %16 = vector.extract_strided_slice %13 {offsets = [0, 128], sizes = [8, 128], strides = [1, 1]} : vector<8x256xf32> to vector<8x128xf32>
    %c0_14 = arith.constant 0 : index
    %c0_15 = arith.constant 0 : index
    %c0_16 = arith.constant 0 : index
    %17 = vector.load %arg6[%c0_14, %c0_15, %c0_16] : memref<1x8x128xf32, #tpu.memory_space<vmem>>, vector<1x8x128xf32>
    %18 = vector.shape_cast %17 : vector<1x8x128xf32> to vector<8x128xf32>
    %19 = vector.shape_cast %16 : vector<8x128xf32> to vector<1x8x128xf32>
    tpu.vector_store %arg6[%c0_14, %c0_15, %c0_16], %19 {strides = array<i32>} : memref<1x8x128xf32, #tpu.memory_space<vmem>>, vector<1x8x128xf32>,
    return
  }
  func.func @transform_0(%arg0: i32) -> (i32, i32, i32) {
    %c0_i32 = arith.constant 0 : i32
    %c0_i32_0 = arith.constant 0 : i32
    %c0_i32_1 = arith.constant 0 : i32
    return %arg0, %c0_i32, %c0_i32_0 : i32, i32, i32
  }
  func.func @transform_1(%arg0: i32) -> (i32, i32) {
    %c0_i32 = arith.constant 0 : i32
    %c0_i32_0 = arith.constant 0 : i32
    %c0_i32_1 = arith.constant 0 : i32
    return %c0_i32, %c0_i32_0 : i32, i32
  }
  func.func @transform_2(%arg0: i32) -> (i32, i32) {
    %c0_i32 = arith.constant 0 : i32
    %c0_i32_0 = arith.constant 0 : i32
    %c0_i32_1 = arith.constant 0 : i32
    return %c0_i32, %c0_i32_0 : i32, i32
  }
  func.func @transform_3(%arg0: i32) -> (i32, i32) {
    %c0_i32 = arith.constant 0 : i32
    %c0_i32_0 = arith.constant 0 : i32
    %c0_i32_1 = arith.constant 0 : i32
    return %c0_i32, %c0_i32_0 : i32, i32
  }
  func.func @transform_4(%arg0: i32) -> (i32, i32) {
    %c0_i32 = arith.constant 0 : i32
    %c0_i32_0 = arith.constant 0 : i32
    %c0_i32_1 = arith.constant 0 : i32
    return %c0_i32, %c0_i32_0 : i32, i32
  }
  func.func @transform_5(%arg0: i32) -> (i32, i32, i32) {
    %c0_i32 = arith.constant 0 : i32
    %c0_i32_0 = arith.constant 0 : i32
    %c0_i32_1 = arith.constant 0 : i32
    return %arg0, %c0_i32, %c0_i32_0 : i32, i32, i32
  }
  func.func @transform_6(%arg0: i32) -> (i32, i32) {
    %c0_i32 = arith.constant 0 : i32
    %c0_i32_0 = arith.constant 0 : i32
    %c0_i32_1 = arith.constant 0 : i32
    return %c0_i32, %c0_i32_0 : i32, i32
  }
}

</mosaic_0001>

<llo_original>
// kernel: rnn_forward_sequence.1
$region0: #{rnn_forward_sequence.1}
  #allocation0 [shape = 'u32[]', space=smem, size = 0x4, offset = 0x4, fixed_abs, tag = 'smem constant byte address 0x4 - core index']
  #allocation1 [shape = 'u32[144,128]{1,0:T(1,128)}', space=vmem, size = 0x12000, scoped, tag = 'internal scratch']
  %s0 = inlined_call_operand.vmem [shape: f32[15,8,128], index: 0, kind: input, shape index: {}]
  %s1 = inlined_call_operand.vmem [shape: f32[8,128], index: 1, kind: input, shape index: {}]
  %s2 = inlined_call_operand.vmem [shape: f32[128,256], index: 2, kind: input, shape index: {}]
  %s3 = inlined_call_operand.vmem [shape: f32[128,256], index: 3, kind: input, shape index: {}]
  %s4 = inlined_call_operand.vmem [shape: f32[1,256], index: 4, kind: input, shape index: {}]
  %s5 = inlined_call_operand.vmem [shape: f32[15,8,128], index: 5, kind: output, shape index: {0}]
  %s6 = inlined_call_operand.vmem [shape: f32[8,128], index: 6, kind: output, shape index: {1}]
  %7 = xla_tuple %s5, %s6
  %s8 = sld [smem:[#allocation0]]
  $region65: #{rnn_forward_sequence.1} parent=0
    _
  %s10 = ssub.s32 1, %s8
  %s11 = scalar_select 0, %s10, %s8
  loop: start=0, step=1, limit=17
  $region2: #{rnn_forward_sequence.1} parent=0 // loop_pre_header
    _
  $region3: #{rnn_forward_sequence.1} parent=0 // loop_header
    %s13 = sphi 0, %s17
    %p14 = scmp.ge.s32.totalorder %s13, 17
    %s23 = sphi 0, %s25
    %s26 = sphi 0, %s23
    %s27 = sphi 0, %s26
    %s43 = sphi 0, %s27
    %s47 = sphi 0, %s47
    %s49 = sphi 0, %s47
    %s50 = sphi 0, %s49
    %s64 = sphi 0, %s50
    %s68 = sphi 0, %s68
    %s70 = sphi 0, %s68
    %s71 = sphi 0, %s70
    %s85 = sphi 0, %s71
    %s89 = sphi 0, %s89
    %s91 = sphi 0, %s89
    %s92 = sphi 0, %s91
    %s106 = sphi 0, %s92
    %s110 = sphi 0, %s110
    %s112 = sphi 0, %s110
    %s113 = sphi 0, %s112
    %s127 = sphi 0, %s113
    %s133 = sphi 0, %s135
    %s136 = sphi 0, %s133
    %s137 = sphi 0, %s136
    %s153 = sphi 0, %s137
    %s157 = sphi 0, %s157
    %s159 = sphi 0, %s157
    %s160 = sphi 0, %s159
    %s174 = sphi 0, %s160
  $region4: #{rnn_forward_sequence.1} parent=0 // loop_header_branch
    %16 = sbr.rel (%p14) target = $region8
  $region5: #{rnn_forward_sequence.1} parent=0 // loop_body
    %s18 = ssub.s32 %s13, 1
    %s19 = ssub.s32 %s13, 2
    %s20 = sadd.s32 %s13, 1
    %s21 = ssub.s32 %s13, %s20
    %p22 = scmp.eq.s32.totalorder %s21, 0
    %s24 = sadd.s32 %s23, 1
    %s25 = scalar_select %p22, %s23, %s24
    %p28 = pneg %p22
    %p29 = scmp.eq.s32.totalorder %s13, 14
    %p30 = por %p28, %p29
    %p31 = scmp.ne.s32.totalorder %s23, %s26
    %p32 = scmp.eq.s32.totalorder %s13, 0
    %p33 = por %p31, %p32
    %p34 = scmp.ne.s32.totalorder %s23, %s26
    %p35 = scmp.eq.s32.totalorder %s18, 14
    %p36 = por %p34, %p35
    %p37 = scmp.ne.s32.totalorder %s26, %s27
    %p38 = scmp.eq.s32.totalorder %s18, 0
    %p39 = por %p37, %p38
    %p40 = scmp.ne.s32.totalorder %s26, %s27
    %p41 = scmp.eq.s32.totalorder %s19, 14
    %p42 = por %p40, %p41
    %p44 = scmp.ne.s32.totalorder %s27, %s43
    %p45 = scmp.eq.s32.totalorder %s19, 0
    %p46 = por %p44, %p45
    %s48 = sadd.s32 %s47, 1
    %p51 = scmp.eq.s32.totalorder %s13, 14
    %p52 = scmp.ne.s32.totalorder %s47, %s49
    %p53 = scmp.eq.s32.totalorder %s13, 0
    %p54 = por %p52, %p53
    %p55 = scmp.ne.s32.totalorder %s47, %s49
    %p56 = scmp.eq.s32.totalorder %s18, 14
    %p57 = por %p55, %p56
    %p58 = scmp.ne.s32.totalorder %s49, %s50
    %p59 = scmp.eq.s32.totalorder %s18, 0
    %p60 = por %p58, %p59
    %p61 = scmp.ne.s32.totalorder %s49, %s50
    %p62 = scmp.eq.s32.totalorder %s19, 14
    %p63 = por %p61, %p62
    %p65 = scmp.ne.s32.totalorder %s50, %s64
    %p66 = scmp.eq.s32.totalorder %s19, 0
    %p67 = por %p65, %p66
    %s69 = sadd.s32 %s68, 1
    %p72 = scmp.eq.s32.totalorder %s13, 14
    %p73 = scmp.ne.s32.totalorder %s68, %s70
    %p74 = scmp.eq.s32.totalorder %s13, 0
    %p75 = por %p73, %p74
    %p76 = scmp.ne.s32.totalorder %s68, %s70
    %p77 = scmp.eq.s32.totalorder %s18, 14
    %p78 = por %p76, %p77
    %p79 = scmp.ne.s32.totalorder %s70, %s71
    %p80 = scmp.eq.s32.totalorder %s18, 0
    %p81 = por %p79, %p80
    %p82 = scmp.ne.s32.totalorder %s70, %s71
    %p83 = scmp.eq.s32.totalorder %s19, 14
    %p84 = por %p82, %p83
    %p86 = scmp.ne.s32.totalorder %s71, %s85
    %p87 = scmp.eq.s32.totalorder %s19, 0
    %p88 = por %p86, %p87
    %s90 = sadd.s32 %s89, 1
    %p93 = scmp.eq.s32.totalorder %s13, 14
    %p94 = scmp.ne.s32.totalorder %s89, %s91
    %p95 = scmp.eq.s32.totalorder %s13, 0
    %p96 = por %p94, %p95
    %p97 = scmp.ne.s32.totalorder %s89, %s91
    %p98 = scmp.eq.s32.totalorder %s18, 14
    %p99 = por %p97, %p98
    %p100 = scmp.ne.s32.totalorder %s91, %s92
    %p101 = scmp.eq.s32.totalorder %s18, 0
    %p102 = por %p100, %p101
    %p103 = scmp.ne.s32.totalorder %s91, %s92
    %p104 = scmp.eq.s32.totalorder %s19, 14
    %p105 = por %p103, %p104
    %p107 = scmp.ne.s32.totalorder %s92, %s106
    %p108 = scmp.eq.s32.totalorder %s19, 0
    %p109 = por %p107, %p108
    %s111 = sadd.s32 %s110, 1
    %p114 = scmp.eq.s32.totalorder %s13, 14
    %p115 = scmp.ne.s32.totalorder %s110, %s112
    %p116 = scmp.eq.s32.totalorder %s13, 0
    %p117 = por %p115, %p116
    %p118 = scmp.ne.s32.totalorder %s110, %s112
    %p119 = scmp.eq.s32.totalorder %s18, 14
    %p120 = por %p118, %p119
    %p121 = scmp.ne.s32.totalorder %s112, %s113
    %p122 = scmp.eq.s32.totalorder %s18, 0
    %p123 = por %p121, %p122
    %p124 = scmp.ne.s32.totalorder %s112, %s113
    %p125 = scmp.eq.s32.totalorder %s19, 14
    %p126 = por %p124, %p125
    %p128 = scmp.ne.s32.totalorder %s113, %s127
    %p129 = scmp.eq.s32.totalorder %s19, 0
    %p130 = por %p128, %p129
    %s131 = ssub.s32 %s13, %s20
    %p132 = scmp.eq.s32.totalorder %s131, 0
    %s134 = sadd.s32 %s133, 1
    %s135 = scalar_select %p132, %s133, %s134
    %p138 = pneg %p132
    %p139 = scmp.eq.s32.totalorder %s13, 14
    %p140 = por %p138, %p139
    %p141 = scmp.ne.s32.totalorder %s133, %s136
    %p142 = scmp.eq.s32.totalorder %s13, 0
    %p143 = por %p141, %p142
    %p144 = scmp.ne.s32.totalorder %s133, %s136
    %p145 = scmp.eq.s32.totalorder %s18, 14
    %p146 = por %p144, %p145
    %p147 = scmp.ne.s32.totalorder %s136, %s137
    %p148 = scmp.eq.s32.totalorder %s18, 0
    %p149 = por %p147, %p148
    %p150 = scmp.ne.s32.totalorder %s136, %s137
    %p151 = scmp.eq.s32.totalorder %s19, 14
    %p152 = por %p150, %p151
    %p154 = scmp.ne.s32.totalorder %s137, %s153
    %p155 = scmp.eq.s32.totalorder %s19, 0
    %p156 = por %p154, %p155
    %s158 = sadd.s32 %s157, 1
    %p161 = scmp.eq.s32.totalorder %s13, 14
    %p162 = scmp.ne.s32.totalorder %s157, %s159
    %p163 = scmp.eq.s32.totalorder %s13, 0
    %p164 = por %p162, %p163
    %p165 = scmp.ne.s32.totalorder %s157, %s159
    %p166 = scmp.eq.s32.totalorder %s18, 14
    %p167 = por %p165, %p166
    %p168 = scmp.ne.s32.totalorder %s159, %s160
    %p169 = scmp.eq.s32.totalorder %s18, 0
    %p170 = por %p168, %p169
    %p171 = scmp.ne.s32.totalorder %s159, %s160
    %p172 = scmp.eq.s32.totalorder %s19, 14
    %p173 = por %p171, %p172
    %p175 = scmp.ne.s32.totalorder %s160, %s174
    %p176 = scmp.eq.s32.totalorder %s19, 0
    %p177 = por %p175, %p176
    %p178 = scmp.le.s32.totalorder 1, %s13
    %p179 = scmp.lt.s32.totalorder %s13, 16
    %p180 = pnand %p178, %p179
    %p181 = pneg %p180
    // Predicated region
    $region9: #{rnn_forward_sequence.1} parent=5 // pred_check
      _
    $region10: #{rnn_forward_sequence.1} parent=5 // pred_check_branch
      %183 = sbr.rel (%p180) target = $region12
    $region11: #{rnn_forward_sequence.1} parent=5 // pred_region
      %s184 = ssub.s32 %s13, 1
      // Predicated region
      $region13: #{rnn_forward_sequence.1} parent=11 // pred_check
        %p185 = pneg %p60
      $region14: #{rnn_forward_sequence.1} parent=11 // pred_check_branch
        %187 = sbr.rel (%p185) target = $region16
      $region15: #{rnn_forward_sequence.1} parent=11 // pred_region
        _
      $region16: #{rnn_forward_sequence.1} parent=11 // pred_fallthru
        _
      // Predicated region
      $region17: #{rnn_forward_sequence.1} parent=11 // pred_check
        %p188 = pneg %p81
      $region18: #{rnn_forward_sequence.1} parent=11 // pred_check_branch
        %190 = sbr.rel (%p188) target = $region20
      $region19: #{rnn_forward_sequence.1} parent=11 // pred_region
        _
      $region20: #{rnn_forward_sequence.1} parent=11 // pred_fallthru
        _
      // Predicated region
      $region21: #{rnn_forward_sequence.1} parent=11 // pred_check
        %p191 = pneg %p102
      $region22: #{rnn_forward_sequence.1} parent=11 // pred_check_branch
        %193 = sbr.rel (%p191) target = $region24
      $region23: #{rnn_forward_sequence.1} parent=11 // pred_region
        _
      $region24: #{rnn_forward_sequence.1} parent=11 // pred_fallthru
        _
      // Predicated region
      $region25: #{rnn_forward_sequence.1} parent=11 // pred_check
        %p194 = pneg %p123
      $region26: #{rnn_forward_sequence.1} parent=11 // pred_check_branch
        %196 = sbr.rel (%p194) target = $region28
      $region27: #{rnn_forward_sequence.1} parent=11 // pred_region
        _
      $region28: #{rnn_forward_sequence.1} parent=11 // pred_fallthru
        _
    $region12: #{rnn_forward_sequence.1} parent=5 // pred_fallthru
      _
    %p197 = scmp.lt.s32.totalorder %s13, 15
    // Predicated region
    $region29: #{rnn_forward_sequence.1} parent=5 // pred_check
      %p198 = pneg %p197
    $region30: #{rnn_forward_sequence.1} parent=5 // pred_check_branch
      %200 = sbr.rel (%p198) target = $region32
    $region31: #{rnn_forward_sequence.1} parent=5 // pred_region
      // Predicated region
      $region33: #{rnn_forward_sequence.1} parent=31 // pred_check
        %p201 = pneg %p33
      $region34: #{rnn_forward_sequence.1} parent=31 // pred_check_branch
        %203 = sbr.rel (%p201) target = $region36
      $region35: #{rnn_forward_sequence.1} parent=31 // pred_region
        %p204 = scmp.lt.s32.totalorder %s13, 14
        %s205 = scalar_select %p204, %s13, 14
        %s206 = smul.addr %s205, 8
        %s207 = scalar_lea.vmem %s0, %s206
      $region36: #{rnn_forward_sequence.1} parent=31 // pred_fallthru
        _
    $region32: #{rnn_forward_sequence.1} parent=5 // pred_fallthru
      _
    %p208 = scmp.le.s32.totalorder 1, %s13
    %p209 = scmp.lt.s32.totalorder %s13, 16
    %p210 = pnand %p208, %p209
    %p211 = pneg %p210
    // Predicated region
    $region37: #{rnn_forward_sequence.1} parent=5 // pred_check
      _
    $region38: #{rnn_forward_sequence.1} parent=5 // pred_check_branch
      %213 = sbr.rel (%p210) target = $region40
    $region39: #{rnn_forward_sequence.1} parent=5 // pred_region
      %s214 = ssub.s32 %s13, 1
      %p215 = scmp.lt.s32.totalorder %s18, 14
      %s216 = scalar_select %p215, %s18, 14
      %s217 = smul.addr %s216, 8
      %s218 = scalar_lea.vmem %s0, %s217
      %p219 = pneg %p39
      %p220 = pneg %p36
      %p221 = pneg %p60
      %p222 = pneg %p57
      %p223 = pneg %p81
      %p224 = pneg %p78
      %p225 = pneg %p102
      %p226 = pneg %p99
      %p227 = pneg %p123
      %p228 = pneg %p120
      %p229 = pneg %p149
      %p230 = pneg %p146
      %p231 = scmp.lt.s32.totalorder %s18, 14
      %s232 = scalar_select %p231, %s18, 14
      %s233 = smul.addr %s232, 8
      %s234 = scalar_lea.vmem %s5, %s233
      %p235 = pneg %p170
      %p236 = pneg %p167
      %p237 = scmp.lt.s32.totalorder %s18, 14
      %s238 = scalar_select %p237, %s18, 14
      %s239 = smul.addr %s238, 8
      %s240 = scalar_lea.vmem %s0, %s239
      %p241 = scmp.lt.s32.totalorder %s18, 14
      %s242 = scalar_select %p241, %s18, 14
      %s243 = smul.addr %s242, 8
      %s244 = scalar_lea.vmem %s5, %s243
      %p245 = scmp.eq.s32.totalorder %s18, 0
      // Predicated region
      $region41: #{rnn_forward_sequence.1} parent=39 // pred_check
        %p246 = pneg %p245
      $region42: #{rnn_forward_sequence.1} parent=39 // pred_check_branch
        %248 = sbr.rel (%p246) target = $region44
      $region43: #{rnn_forward_sequence.1} parent=39 // pred_region
        %v249 = vld [vmem:[%s1] sm:$0xff]
        %250 = vst [vmem:[%s6] sm:$0xff] %v249
      $region44: #{rnn_forward_sequence.1} parent=39 // pred_fallthru
        _
      %v251 = vld [vmem:[%s6] sm:$0xff]
      %v252 = vld [vmem:[%s240] sm:$0xff]
      %v253 = vld [vmem:[%s2] sm:$0xff]
      %v254 = vld [vmem:[%s2 + $0x8] sm:$0xff]
      %v255 = vld [vmem:[%s2 + $0x10] sm:$0xff]
      %v256 = vld [vmem:[%s2 + $0x18] sm:$0xff]
      %v257 = vld [vmem:[%s2 + $0x20] sm:$0xff]
      %v258 = vld [vmem:[%s2 + $0x28] sm:$0xff]
      %v259 = vld [vmem:[%s2 + $0x30] sm:$0xff]
      %v260 = vld [vmem:[%s2 + $0x38] sm:$0xff]
      %v261 = vld [vmem:[%s2 + $0x40] sm:$0xff]
      %v262 = vld [vmem:[%s2 + $0x48] sm:$0xff]
      %v263 = vld [vmem:[%s2 + $0x50] sm:$0xff]
      %v264 = vld [vmem:[%s2 + $0x58] sm:$0xff]
      %v265 = vld [vmem:[%s2 + $0x60] sm:$0xff]
      %v266 = vld [vmem:[%s2 + $0x68] sm:$0xff]
      %v267 = vld [vmem:[%s2 + $0x70] sm:$0xff]
      %v268 = vld [vmem:[%s2 + $0x78] sm:$0xff]
      %v269 = vld [vmem:[%s2 + $0x80] sm:$0xff]
      %v270 = vld [vmem:[%s2 + $0x88] sm:$0xff]
      %v271 = vld [vmem:[%s2 + $0x90] sm:$0xff]
      %v272 = vld [vmem:[%s2 + $0x98] sm:$0xff]
      %v273 = vld [vmem:[%s2 + $0xa0] sm:$0xff]
      %v274 = vld [vmem:[%s2 + $0xa8] sm:$0xff]
      %v275 = vld [vmem:[%s2 + $0xb0] sm:$0xff]
      %v276 = vld [vmem:[%s2 + $0xb8] sm:$0xff]
      %v277 = vld [vmem:[%s2 + $0xc0] sm:$0xff]
      %v278 = vld [vmem:[%s2 + $0xc8] sm:$0xff]
      %v279 = vld [vmem:[%s2 + $0xd0] sm:$0xff]
      %v280 = vld [vmem:[%s2 + $0xd8] sm:$0xff]
      %v281 = vld [vmem:[%s2 + $0xe0] sm:$0xff]
      %v282 = vld [vmem:[%s2 + $0xe8] sm:$0xff]
      %v283 = vld [vmem:[%s2 + $0xf0] sm:$0xff]
      %v284 = vld [vmem:[%s2 + $0xf8] sm:$0xff]
      %v285 = vld [vmem:[%s3] sm:$0xff]
      %v286 = vld [vmem:[%s3 + $0x8] sm:$0xff]
      %v287 = vld [vmem:[%s3 + $0x10] sm:$0xff]
      %v288 = vld [vmem:[%s3 + $0x18] sm:$0xff]
      %v289 = vld [vmem:[%s3 + $0x20] sm:$0xff]
      %v290 = vld [vmem:[%s3 + $0x28] sm:$0xff]
      %v291 = vld [vmem:[%s3 + $0x30] sm:$0xff]
      %v292 = vld [vmem:[%s3 + $0x38] sm:$0xff]
      %v293 = vld [vmem:[%s3 + $0x40] sm:$0xff]
      %v294 = vld [vmem:[%s3 + $0x48] sm:$0xff]
      %v295 = vld [vmem:[%s3 + $0x50] sm:$0xff]
      %v296 = vld [vmem:[%s3 + $0x58] sm:$0xff]
      %v297 = vld [vmem:[%s3 + $0x60] sm:$0xff]
      %v298 = vld [vmem:[%s3 + $0x68] sm:$0xff]
      %v299 = vld [vmem:[%s3 + $0x70] sm:$0xff]
      %v300 = vld [vmem:[%s3 + $0x78] sm:$0xff]
      %v301 = vld [vmem:[%s3 + $0x80] sm:$0xff]
      %v302 = vld [vmem:[%s3 + $0x88] sm:$0xff]
      %v303 = vld [vmem:[%s3 + $0x90] sm:$0xff]
      %v304 = vld [vmem:[%s3 + $0x98] sm:$0xff]
      %v305 = vld [vmem:[%s3 + $0xa0] sm:$0xff]
      %v306 = vld [vmem:[%s3 + $0xa8] sm:$0xff]
      %v307 = vld [vmem:[%s3 + $0xb0] sm:$0xff]
      %v308 = vld [vmem:[%s3 + $0xb8] sm:$0xff]
      %v309 = vld [vmem:[%s3 + $0xc0] sm:$0xff]
      %v310 = vld [vmem:[%s3 + $0xc8] sm:$0xff]
      %v311 = vld [vmem:[%s3 + $0xd0] sm:$0xff]
      %v312 = vld [vmem:[%s3 + $0xd8] sm:$0xff]
      %v313 = vld [vmem:[%s3 + $0xe0] sm:$0xff]
      %v314 = vld [vmem:[%s3 + $0xe8] sm:$0xff]
      %v315 = vld [vmem:[%s3 + $0xf0] sm:$0xff]
      %v316 = vld [vmem:[%s3 + $0xf8] sm:$0xff]
      %317 = vmatprep.subr.mxu0 %v316
      %318 = vmatpush1.msra.mxu0 %v315
      %319 = vmatprep.subr.mxu0 %v314
      %320 = vmatpush1.msra.mxu0 %v313
      %321 = vmatprep.subr.mxu0 %v312
      %322 = vmatpush1.msra.mxu0 %v311
      %323 = vmatprep.subr.mxu0 %v310
      %324 = vmatpush1.msra.mxu0 %v309
      %325 = vmatprep.subr.mxu0 %v308
      %326 = vmatpush1.msra.mxu0 %v307
      %327 = vmatprep.subr.mxu0 %v306
      %328 = vmatpush1.msra.mxu0 %v305
      %329 = vmatprep.subr.mxu0 %v304
      %330 = vmatpush1.msra.mxu0 %v303
      %331 = vmatprep.subr.mxu0 %v302
      %332 = vmatpush1.msra.mxu0 %v301
      %333 = vmatprep.subr.mxu0 %v300
      %334 = vmatpush1.msra.mxu0 %v299
      %335 = vmatprep.subr.mxu0 %v298
      %336 = vmatpush1.msra.mxu0 %v297
      %337 = vmatprep.subr.mxu0 %v296
      %338 = vmatpush1.msra.mxu0 %v295
      %339 = vmatprep.subr.mxu0 %v294
      %340 = vmatpush1.msra.mxu0 %v293
      %341 = vmatprep.subr.mxu0 %v292
      %342 = vmatpush1.msra.mxu0 %v291
      %343 = vmatprep.subr.mxu0 %v290
      %344 = vmatpush1.msra.mxu0 %v289
      %345 = vmatprep.subr.mxu0 %v288
      %346 = vmatpush1.msra.mxu0 %v287
      %347 = vmatprep.subr.mxu0 %v286
      %348 = vmatpush1.msra.mxu0 %v285
      %349 = vmatprep.subr.mxu0 0.0
      %350 = vmatpush2.msra.mxu0 0.0
      %351 = vmatprep.subr.mxu0 0.0
      %352 = vmatpush2.msra.mxu0 0.0
      %353 = vmatprep.subr.mxu0 0.0
      %354 = vmatpush2.msra.mxu0 0.0
      %355 = vmatprep.subr.mxu0 0.0
      %356 = vmatpush2.msra.mxu0 0.0
      %357 = vmatprep.subr.mxu0 0.0
      %358 = vmatpush2.msra.mxu0 0.0
      %359 = vmatprep.subr.mxu0 0.0
      %360 = vmatpush2.msra.mxu0 0.0
      %361 = vmatprep.subr.mxu0 0.0
      %362 = vmatpush2.msra.mxu0 0.0
      %363 = vmatprep.subr.mxu0 0.0
      %364 = vmatpush2.msra.mxu0 0.0
      %365 = vmatprep.subr.mxu0 0.0
      %366 = vmatpush2.msra.mxu0 0.0
      %367 = vmatprep.subr.mxu0 0.0
      %368 = vmatpush2.msra.mxu0 0.0
      %369 = vmatprep.subr.mxu0 0.0
      %370 = vmatpush2.msra.mxu0 0.0
      %371 = vmatprep.subr.mxu0 0.0
      %372 = vmatpush2.msra.mxu0 0.0
      %373 = vmatprep.subr.mxu0 0.0
      %374 = vmatpush2.msra.mxu0 0.0
      %375 = vmatprep.subr.mxu0 0.0
      %376 = vmatpush2.msra.mxu0 0.0
      %377 = vmatprep.subr.mxu0 0.0
      %378 = vmatpush2.msra.mxu0 0.0
      %379 = vmatprep.subr.mxu0 0.0
      %380 = vmatpush2.msra.mxu0 0.0
      %381 = vmatprep.mubr.f32.mxu0 0.0
      %382 = vmatmul.mubr.f32.gmra.mxu0 %v251
      %v383 = vpop.f32.mrf.mxu0
      %v384 = vadd.f32 0.0, %v383
      %v385 = vpop.f32.mrf.mxu0
      %v386 = vadd.f32 0.0, %v385
      %387 = vdwg.mxu0
      %388 = vmatprep.subr.mxu0 %v284
      %389 = vmatpush1.msra.mxu0 %v283
      %390 = vmatprep.subr.mxu0 %v282
      %391 = vmatpush1.msra.mxu0 %v281
      %392 = vmatprep.subr.mxu0 %v280
      %393 = vmatpush1.msra.mxu0 %v279
      %394 = vmatprep.subr.mxu0 %v278
      %395 = vmatpush1.msra.mxu0 %v277
      %396 = vmatprep.subr.mxu0 %v276
      %397 = vmatpush1.msra.mxu0 %v275
      %398 = vmatprep.subr.mxu0 %v274
      %399 = vmatpush1.msra.mxu0 %v273
      %400 = vmatprep.subr.mxu0 %v272
      %401 = vmatpush1.msra.mxu0 %v271
      %402 = vmatprep.subr.mxu0 %v270
      %403 = vmatpush1.msra.mxu0 %v269
      %404 = vmatprep.subr.mxu0 %v268
      %405 = vmatpush1.msra.mxu0 %v267
      %406 = vmatprep.subr.mxu0 %v266
      %407 = vmatpush1.msra.mxu0 %v265
      %408 = vmatprep.subr.mxu0 %v264
      %409 = vmatpush1.msra.mxu0 %v263
      %410 = vmatprep.subr.mxu0 %v262
      %411 = vmatpush1.msra.mxu0 %v261
      %412 = vmatprep.subr.mxu0 %v260
      %413 = vmatpush1.msra.mxu0 %v259
      %414 = vmatprep.subr.mxu0 %v258
      %415 = vmatpush1.msra.mxu0 %v257
      %416 = vmatprep.subr.mxu0 %v256
      %417 = vmatpush1.msra.mxu0 %v255
      %418 = vmatprep.subr.mxu0 %v254
      %419 = vmatpush1.msra.mxu0 %v253
      %420 = vmatprep.subr.mxu0 0.0
      %421 = vmatpush2.msra.mxu0 0.0
      %422 = vmatprep.subr.mxu0 0.0
      %423 = vmatpush2.msra.mxu0 0.0
      %424 = vmatprep.subr.mxu0 0.0
      %425 = vmatpush2.msra.mxu0 0.0
      %426 = vmatprep.subr.mxu0 0.0
      %427 = vmatpush2.msra.mxu0 0.0
      %428 = vmatprep.subr.mxu0 0.0
      %429 = vmatpush2.msra.mxu0 0.0
      %430 = vmatprep.subr.mxu0 0.0
      %431 = vmatpush2.msra.mxu0 0.0
      %432 = vmatprep.subr.mxu0 0.0
      %433 = vmatpush2.msra.mxu0 0.0
      %434 = vmatprep.subr.mxu0 0.0
      %435 = vmatpush2.msra.mxu0 0.0
      %436 = vmatprep.subr.mxu0 0.0
      %437 = vmatpush2.msra.mxu0 0.0
      %438 = vmatprep.subr.mxu0 0.0
      %439 = vmatpush2.msra.mxu0 0.0
      %440 = vmatprep.subr.mxu0 0.0
      %441 = vmatpush2.msra.mxu0 0.0
      %442 = vmatprep.subr.mxu0 0.0
      %443 = vmatpush2.msra.mxu0 0.0
      %444 = vmatprep.subr.mxu0 0.0
      %445 = vmatpush2.msra.mxu0 0.0
      %446 = vmatprep.subr.mxu0 0.0
      %447 = vmatpush2.msra.mxu0 0.0
      %448 = vmatprep.subr.mxu0 0.0
      %449 = vmatpush2.msra.mxu0 0.0
      %450 = vmatprep.subr.mxu0 0.0
      %451 = vmatpush2.msra.mxu0 0.0
      %452 = vmatprep.mubr.f32.mxu0 0.0
      %453 = vmatmul.mubr.f32.gmra.mxu0 %v252
      %v454 = vpop.f32.mrf.mxu0
      %v455 = vadd.f32 %v384, %v454
      %v456 = vpop.f32.mrf.mxu0
      %v457 = vadd.f32 %v386, %v456
      %458 = vdwg.mxu0
      %v459 = vld [vmem:[%s4] sm:$0x3]
      %v461 = vlaneseq
      %v462 = vshrl.u32 %v461, 7
      %v463 = vsub.s32 0, %v462
      %v464 = vrot.slane %v459, %v463
      %v465 = vlaneseq
      %v466 = vshrl.u32 %v465, 7
      %v467 = vsub.s32 1, %v466
      %v468 = vrot.slane %v459, %v467
      %v471 = vadd.f32 %v455, %v464
      %v472 = vadd.f32 %v457, %v468
      %473 = vst [vmem:[%s6] sm:$0xff] %v471
      %474 = vst [vmem:[%s244] sm:$0xff] %v472
      %p475 = scmp.lt.s32.totalorder %s18, 14
      %s476 = scalar_select %p475, %s18, 14
      %s477 = smul.addr %s476, 8
      %s478 = scalar_lea.vmem %s5, %s477
      // Predicated region
      $region45: #{rnn_forward_sequence.1} parent=39 // pred_check
        %p479 = pneg %p146
      $region46: #{rnn_forward_sequence.1} parent=39 // pred_check_branch
        %481 = sbr.rel (%p479) target = $region48
      $region47: #{rnn_forward_sequence.1} parent=39 // pred_region
        _
      $region48: #{rnn_forward_sequence.1} parent=39 // pred_fallthru
        _
      // Predicated region
      $region49: #{rnn_forward_sequence.1} parent=39 // pred_check
        %p482 = pneg %p167
      $region50: #{rnn_forward_sequence.1} parent=39 // pred_check_branch
        %484 = sbr.rel (%p482) target = $region52
      $region51: #{rnn_forward_sequence.1} parent=39 // pred_region
        _
      $region52: #{rnn_forward_sequence.1} parent=39 // pred_fallthru
        _
      // Predicated region
      $region53: #{rnn_forward_sequence.1} parent=39 // pred_check
        %p485 = pneg %p167
      $region54: #{rnn_forward_sequence.1} parent=39 // pred_check_branch
        %487 = sbr.rel (%p485) target = $region56
      $region55: #{rnn_forward_sequence.1} parent=39 // pred_region
        _
      $region56: #{rnn_forward_sequence.1} parent=39 // pred_fallthru
        _
    $region40: #{rnn_forward_sequence.1} parent=5 // pred_fallthru
      _
    %p488 = scmp.le.s32.totalorder 2, %s13
    // Predicated region
    $region57: #{rnn_forward_sequence.1} parent=5 // pred_check
      %p489 = pneg %p488
    $region58: #{rnn_forward_sequence.1} parent=5 // pred_check_branch
      %491 = sbr.rel (%p489) target = $region60
    $region59: #{rnn_forward_sequence.1} parent=5 // pred_region
      %s492 = ssub.s32 %s13, 2
      // Predicated region
      $region61: #{rnn_forward_sequence.1} parent=59 // pred_check
        %p493 = pneg %p152
      $region62: #{rnn_forward_sequence.1} parent=59 // pred_check_branch
        %495 = sbr.rel (%p493) target = $region64
      $region63: #{rnn_forward_sequence.1} parent=59 // pred_region
        %p496 = scmp.lt.s32.totalorder %s19, 14
        %s497 = scalar_select %p496, %s19, 14
        %s498 = smul.addr %s497, 8
        %s499 = scalar_lea.vmem %s5, %s498
      $region64: #{rnn_forward_sequence.1} parent=59 // pred_fallthru
        _
    $region60: #{rnn_forward_sequence.1} parent=5 // pred_fallthru
      _
  $region6: #{rnn_forward_sequence.1} parent=0 // loop_footer
    %s17 = sadd.s32 1, %s13
  $region7: #{rnn_forward_sequence.1} parent=0 // loop_footer_branch
    %12 = sbr.rel target = $region3
  $region8: #{rnn_forward_sequence.1} parent=0 // loop_exit
    _

</llo_original>
